<compile_context>
chip_gen: v7x
topology: tpu7x:2x2x1
jax: 0.10.0
libtpu: 0.0.40
codegen_flags: <defaults>
</compile_context>

<pallas_src>
import functools

import jax
import jax.numpy as jnp
from jax import lax
from jax.experimental import pallas as pl
from jax.experimental.pallas import tpu as pltpu

GAMMA = 4.0
ALPHA = 0.25

_LANE = 128
_OUT_ROWS = 8     # sublane-aligned output stripe per grid step
_OUT_COLS = 128   # lane-dense output stripe


def _align_up(x, a):
    return -(-x // a) * a


def _pow_static(u, gamma):
    """u ** gamma with gamma a static Python scalar.

    Integer gamma lowers to a handful of VALU multiplies (keeps the single EUP
    free for the big exp) and is NaN-safe even if fp rounding makes u slightly
    negative (pt > 1).
    """
    g = float(gamma)
    if g.is_integer() and 0 <= g <= 64:
        p = int(g)
        if p == 0:
            return jnp.ones_like(u)
        result = None
        base = u
        while p:
            if p & 1:
                result = base if result is None else result * base
            p >>= 1
            if p:
                base = base * base
        return result
    # Non-integer gamma: pow(negative, float) -> NaN, so clamp the base.
    return jnp.maximum(u, 0.0) ** g


def _focal_loss_kernel(logits_ref, targets_ref, out_ref, *,
                       gamma, alpha, n_rows, tile_n):
    # logits_ref:  [tile_n, C] (native dtype)
    # targets_ref: [1, tile_n] int32 (lane-dense)
    # out_ref:     [8, 128] f32 stripe holding this tile's partial focal sum.
    x = logits_ref[...].astype(jnp.float32)            # one upcast per tile

    # Lane-dense targets row -> per-row column (tiny tile_n-element relayout).
    t_col = jnp.reshape(targets_ref[...], (tile_n, 1))

    # Numerically stable log-sum-exp along the class (lane) axis.
    m = jnp.max(x, axis=-1, keepdims=True)              # [tile_n, 1]
    shifted = x - m

    # Target logit via a one-hot compare + masked reduce (no in-kernel gather).
    col = lax.broadcasted_iota(jnp.int32, shifted.shape, 1)
    tgt_shift = jnp.sum(jnp.where(col == t_col, shifted, 0.0),
                        axis=-1, keepdims=True)          # [tile_n, 1]

    s = jnp.exp(shifted)                                 # single full-tile exp
    sumexp = jnp.sum(s, axis=-1, keepdims=True)          # [tile_n, 1]

    ce = jnp.log(sumexp) - tgt_shift                     # [tile_n, 1], >= 0
    pt = jnp.exp(-ce)                                    # per-row EUP op

    focal = alpha * _pow_static(1.0 - pt, gamma) * ce    # [tile_n, 1]

    # Mask padded tail rows of the last tile (compiled away when N % tile_n == 0).
    # Keep this a select, not a multiply: padded logits rows can be NaN/Inf.
    if n_rows % tile_n != 0:
        row = (lax.broadcasted_iota(jnp.int32, focal.shape, 0)
               + pl.program_id(0) * tile_n)
        focal = jnp.where(row < n_rows, focal, 0.0)

    partial = jnp.sum(focal)
    out_ref[...] = jnp.broadcast_to(partial, out_ref.shape)


def _generation_params():
    """(per-tile working-set byte budget, vmem_limit_bytes), per TPU generation."""
    try:
        vmem_phys = int(pltpu.get_tpu_info().vmem_capacity_bytes)
    except Exception:
        vmem_phys = 64 * 1024 * 1024          # fall back to the tightest chip (v7x)
    if vmem_phys >= 96 * 1024 * 1024:         # v5e / v6e: 128 MiB physical VMEM
        return 40 * 1024 * 1024, 64 * 1024 * 1024
    return 26 * 1024 * 1024, 48 * 1024 * 1024  # v7x: 64 MiB physical VMEM


def _choose_tile_n(n, c, itemsize, working_budget_bytes):
    """Row-tile height from a conservative per-tile VMEM working-set budget."""
    if n <= _LANE:
        return n                               # single block spanning all rows
    c_pad = _align_up(c, _LANE)                # VMEM lanes are padded to 128
    # Per-row working set: 2 double-buffered native input rows, ~5 full-width
    # f32 temporaries, ~6 lane-padded per-row f32 column temporaries.
    row_bytes = 2 * c_pad * itemsize + 5 * c_pad * 4 + 6 * _LANE * 4
    t = (working_budget_bytes // max(1, row_bytes)) // _LANE * _LANE
    t = max(_LANE, t)
    # Keep >= 2 grid blocks so both v7x TensorCores get work ("parallel" axis).
    t = min(t, _align_up(_align_up(n, _LANE) // 2, _LANE))
    return t


def focal_loss(logits, targets, *, gamma=GAMMA, alpha=ALPHA, tile_n=None):
    """logits: [N, C] (f32 or bf16), targets: [N] int. Returns scalar f32."""
    n, c = logits.shape
    working_budget, vmem_limit = _generation_params()
    if tile_n is None:
        tile_n = _choose_tile_n(n, c, jnp.dtype(logits.dtype).itemsize,
                                working_budget)
    num_blocks = pl.cdiv(n, tile_n)

    # Lane-dense targets: [num_blocks, tile_n] int32 (a [N, 1] column would be
    # lane-padded to 128 in the TPU tiled layout -> ~512 B of DMA per row).
    t_i32 = targets.astype(jnp.int32)
    pad = num_blocks * tile_n - n
    if pad:
        t_i32 = jnp.pad(t_i32, (0, pad))       # pad with class 0; rows are masked
    targets2d = t_i32.reshape(num_blocks, tile_n)

    # TODO(synk): for C < 128 fold k = 128 // C rows into the lane axis in the
    # wrapper (segmented reductions in-kernel) to recover the ~128/C x HBM loss
    # from lane-padded logits; for vocab-scale C add a second grid axis over C
    # with an online (max, sumexp) accumulator so a row tile never holds the
    # full class dimension in VMEM.

    kernel = functools.partial(_focal_loss_kernel, gamma=gamma, alpha=alpha,
                               n_rows=n, tile_n=tile_n)

    partials = pl.pallas_call(
        kernel,
        out_shape=jax.ShapeDtypeStruct((num_blocks * _OUT_ROWS, _OUT_COLS),
                                       jnp.float32),
        grid=(num_blocks,),
        in_specs=[
            pl.BlockSpec((tile_n, c), lambda i: (i, 0)),   # logits, native dtype
            pl.BlockSpec((1, tile_n), lambda i: (i, 0)),   # lane-dense targets
        ],
        out_specs=pl.BlockSpec((_OUT_ROWS, _OUT_COLS), lambda i: (i, 0)),
        compiler_params=pltpu.CompilerParams(
            dimension_semantics=("parallel",),   # rows are independent
            vmem_limit_bytes=vmem_limit,
        ),
    )(logits, targets2d)

    # Each grid step broadcast its partial sum over its own (8,128) stripe; sum
    # the whole stripe array (no strided gather) and renormalize.
    return jnp.sum(partials) / (_OUT_ROWS * _OUT_COLS) / n


def _focal_loss_ref(logits, targets, gamma=GAMMA, alpha=ALPHA):
    logp = jax.nn.log_softmax(logits.astype(jnp.float32), axis=-1)
    ce = -jnp.take_along_axis(logp, targets[:, None].astype(jnp.int32),
                              axis=-1)[:, 0]
    pt = jnp.exp(-ce)
    return jnp.mean(alpha * (1.0 - pt) ** gamma * ce)


if __name__ == "__main__":
    key = jax.random.PRNGKey(0)
    k1, k2, k3, k4, k5, k6 = jax.random.split(key, 6)

    # Case 1: small exact-fit problem (single block), matches the module spec.
    N1, C1 = 8, 32
    logits1 = jax.random.normal(k1, (N1, C1), dtype=jnp.float32)
    targets1 = jax.random.randint(k2, (N1,), 0, C1, dtype=jnp.int32)
    loss1 = focal_loss(logits1, targets1)
    jax.block_until_ready(loss1)
    ref1 = _focal_loss_ref(logits1, targets1)
    assert jnp.allclose(loss1, ref1, atol=1e-5, rtol=1e-5), (loss1, ref1)

    # Case 2: explicit multi-block grid with a padded tail tile (exercises the
    # row mask and the padded lane-dense targets path).
    N2, C2 = 40, 32
    logits2 = jax.random.normal(k3, (N2, C2), dtype=jnp.float32)
    targets2 = jax.random.randint(k4, (N2,), 0, C2, dtype=jnp.int32)
    loss2 = focal_loss(logits2, targets2, tile_n=16)   # 3 blocks, last partial
    jax.block_until_ready(loss2)
    ref2 = _focal_loss_ref(logits2, targets2)
    assert jnp.allclose(loss2, ref2, atol=1e-5, rtol=1e-5), (loss2, ref2)

    # Case 3: auto-tiled bf16 input, >= 2 blocks with a masked tail row range.
    N3, C3 = 300, 128
    logits3 = jax.random.normal(k5, (N3, C3),
                                dtype=jnp.float32).astype(jnp.bfloat16)
    targets3 = jax.random.randint(k6, (N3,), 0, C3, dtype=jnp.int32)
    loss3 = focal_loss(logits3, targets3)
    jax.block_until_ready(loss3)
    ref3 = _focal_loss_ref(logits3, targets3)
    assert jnp.allclose(loss3, ref3, atol=1e-5, rtol=1e-5), (loss3, ref3)

    print("KERNEL_OK")
</pallas_src>

<mosaic_0001>
module attributes {stable_mosaic.version = 11 : i64} {
  func.func @_focal_loss_kernel(%arg0: i32, %arg1: memref<8x32xf32, #tpu.memory_space<vmem>>, %arg2: memref<1x8xi32, #tpu.memory_space<vmem>>, %arg3: memref<8x128xf32, #tpu.memory_space<vmem>>) attributes {dimension_semantics = [#tpu.dimension_semantics<parallel>], iteration_bounds = array<i64: 1>, scalar_prefetch = 0 : i64, scratch_operands = 0 : i64, tpu.core_type = #tpu.core_type<tc>, window_params = [{transform_indices = @transform_0, window_bounds = array<i64: 8, 32>}, {transform_indices = @transform_1, window_bounds = array<i64: 1, 8>}, {transform_indices = @transform_2, window_bounds = array<i64: 8, 128>}]} {
    %c0 = arith.constant 0 : index
    %c0_0 = arith.constant 0 : index
    %0 = vector.load %arg1[%c0, %c0_0] : memref<8x32xf32, #tpu.memory_space<vmem>>, vector<8x32xf32>
    %c0_1 = arith.constant 0 : index
    %c0_2 = arith.constant 0 : index
    %1 = vector.load %arg2[%c0_1, %c0_2] : memref<1x8xi32, #tpu.memory_space<vmem>>, vector<1x8xi32>
    %2 = vector.shape_cast %1 : vector<1x8xi32> to vector<8x1xi32>
    %cst = arith.constant dense<0xFF800000> : vector<8xf32>
    %3 = vector.multi_reduction <maximumf>, %0, %cst [1] : vector<8x32xf32> to vector<8xf32>
    %4 = vector.shape_cast %3 : vector<8xf32> to vector<8x1xf32>
    %5 = vector.broadcast %4 : vector<8x1xf32> to vector<8x32xf32>
    %6 = arith.subf %0, %5 : vector<8x32xf32>
    %7 = tpu.iota {dimensions = array<i32: 1>} : vector<8x32xi32>
    %8 = vector.broadcast %2 : vector<8x1xi32> to vector<8x32xi32>
    %9 = arith.cmpi eq, %7, %8 : vector<8x32xi32>
    %cst_3 = arith.constant 0.000000e+00 : f32
    %10 = vector.broadcast %cst_3 : f32 to vector<8x32xf32>
    %11 = arith.select %9, %6, %10 : vector<8x32xi1>, vector<8x32xf32>
    %cst_4 = arith.constant dense<0.000000e+00> : vector<8xf32>
    %12 = vector.multi_reduction <add>, %11, %cst_4 [1] : vector<8x32xf32> to vector<8xf32>
    %13 = vector.shape_cast %12 : vector<8xf32> to vector<8x1xf32>
    %14 = math.exp %6 : vector<8x32xf32>
    %cst_5 = arith.constant dense<0.000000e+00> : vector<8xf32>
    %15 = vector.multi_reduction <add>, %14, %cst_5 [1] : vector<8x32xf32> to vector<8xf32>
    %16 = vector.shape_cast %15 : vector<8xf32> to vector<8x1xf32>
    %17 = math.log %16 : vector<8x1xf32>
    %18 = arith.subf %17, %13 : vector<8x1xf32>
    %cst_6 = arith.constant 0.000000e+00 : f32
    %19 = vector.broadcast %cst_6 : f32 to vector<8x1xf32>
    %20 = arith.subf %19, %18 : vector<8x1xf32>
    %21 = math.exp %20 : vector<8x1xf32>
    %cst_7 = arith.constant 1.000000e+00 : f32
    %22 = vector.broadcast %cst_7 : f32 to vector<8x1xf32>
    %23 = arith.subf %22, %21 : vector<8x1xf32>
    %24 = arith.mulf %23, %23 : vector<8x1xf32>
    %25 = arith.mulf %24, %24 : vector<8x1xf32>
    %cst_8 = arith.constant 2.500000e-01 : f32
    %26 = vector.broadcast %cst_8 : f32 to vector<8x1xf32>
    %27 = arith.mulf %26, %25 : vector<8x1xf32>
    %28 = arith.mulf %27, %18 : vector<8x1xf32>
    %29 = vector.shape_cast %28 : vector<8x1xf32> to vector<1x8x1xf32>
    %cst_9 = arith.constant dense<0.000000e+00> : vector<1xf32>
    %30 = vector.multi_reduction <add>, %29, %cst_9 [1, 2] : vector<1x8x1xf32> to vector<1xf32>
    %31 = vector.shape_cast %30 : vector<1xf32> to vector<1x1x1xf32>
    %32 = vector.extract %31[0, 0, 0] : f32 from vector<1x1x1xf32>
    %33 = vector.broadcast %32 : f32 to vector<8x128xf32>
    %c0_10 = arith.constant 0 : index
    %c0_11 = arith.constant 0 : index
    %34 = vector.load %arg3[%c0_10, %c0_11] : memref<8x128xf32, #tpu.memory_space<vmem>>, vector<8x128xf32>
    tpu.vector_store %arg3[%c0_10, %c0_11], %33 {strides = array<i32>} : memref<8x128xf32, #tpu.memory_space<vmem>>, vector<8x128xf32>,
    return
  }
  func.func @transform_0(%arg0: i32) -> (i32, i32) {
    %c0_i32 = arith.constant 0 : i32
    %c0_i32_0 = arith.constant 0 : i32
    return %arg0, %c0_i32 : i32, i32
  }
  func.func @transform_1(%arg0: i32) -> (i32, i32) {
    %c0_i32 = arith.constant 0 : i32
    %c0_i32_0 = arith.constant 0 : i32
    return %arg0, %c0_i32 : i32, i32
  }
  func.func @transform_2(%arg0: i32) -> (i32, i32) {
    %c0_i32 = arith.constant 0 : i32
    %c0_i32_0 = arith.constant 0 : i32
    return %arg0, %c0_i32 : i32, i32
  }
}

</mosaic_0001>

<llo_original>
// kernel: tpu_custom_call.1
$region0: #{tpu_custom_call.1}
  #allocation0 [shape = 'u32[]', space=smem, size = 0x4, offset = 0x4, fixed_abs, tag = 'smem constant byte address 0x4 - core index']
  #allocation1 [shape = 'u32[144,128]{1,0:T(1,128)}', space=vmem, size = 0x12000, scoped, tag = 'internal scratch']
  %s0 = inlined_call_operand.hbm [shape: f32[8,32], index: 0, kind: input, shape index: {}]
  %s1 = inlined_call_operand.vmem [shape: s32[1,8], index: 1, kind: input, shape index: {}]
  %s2 = inlined_call_operand.hbm [shape: f32[8,128], index: 2, kind: output, shape index: {}]
  %s3 = sld [smem:[#allocation0]]
  $region22: #{tpu_custom_call.1} parent=0
    _
  %s5 = ssub.s32 1, %s3
  %s6 = scalar_select 0, %s5, %s3
  $region1: #{tpu_custom_call.1} parent=0
    #allocation2 [shape = 'u8[4096]{0}', space=vmem, size = 0x1000, scoped, tag = 'input window, operand 0, single buffered']
    #allocation3 [shape = 's32[1]{0}', space=sflag, size = 0x4, scoped, tag = 'scoped memory for tpu_custom_call.1']
    #allocation4 [shape = 's32[1]{0}', space=sflag, size = 0x4, scoped, tag = 'scoped memory for tpu_custom_call.1']
    #allocation5 [shape = 'u8[4096]{0}', space=vmem, size = 0x1000, scoped, tag = 'output window, operand 0, single buffered']
    %7 = vsyncpa [#allocation3], 0
    %8 = vsyncpa [#allocation4], 0
    // Predicated region
    $region2: #{tpu_custom_call.1} parent=1 // pred_check
      _
    $region3: #{tpu_custom_call.1} parent=1 // pred_check_branch
      %10 = sbr.rel (0) target = $region5
    $region4: #{tpu_custom_call.1} parent=1 // pred_region
      %s12 = ssub.s32 128, 128
      %13 = vsyncadd [#allocation3], %s12
      %s15 = sshll.u32 [#allocation2], 4
      %s16 = int_to_ptr.vmem [resolvable:$true] %s15
      %18 = dma.hbm_to_vmem [thread:$0]  %s0, 128, %s16, [#allocation3]
    $region5: #{tpu_custom_call.1} parent=1 // pred_fallthru
      _
    // Predicated region
    $region6: #{tpu_custom_call.1} parent=1 // pred_check
      _
    $region7: #{tpu_custom_call.1} parent=1 // pred_check_branch
      %20 = sbr.rel (0) target = $region9
    $region8: #{tpu_custom_call.1} parent=1 // pred_region
      _
    $region9: #{tpu_custom_call.1} parent=1 // pred_fallthru
      _
    // Predicated region
    $region10: #{tpu_custom_call.1} parent=1 // pred_check
      _
    $region11: #{tpu_custom_call.1} parent=1 // pred_check_branch
      %22 = sbr.rel (0) target = $region13
    $region12: #{tpu_custom_call.1} parent=1 // pred_region
      %23 = dma.done [#allocation3], 128
    $region13: #{tpu_custom_call.1} parent=1 // pred_fallthru
      _
    %v24 = vld [vmem:[#allocation2] sm:$0xff]
    %v25 = vld [vmem:[%s1] sm:$0x1]
    %v26 = vlaneseq
    %v27 = vshrl.u32 %v26, 7
    %v28 = vsub.s32 0, %v27
    %v29 = vrot.slane %v25, %v28
    %31 = vbcast.lane.b32.xlu0 %v29, 256
    %v32 = vpop.permute.xlu0 %31
    %vm33 = vcmask 261120
    %v34 = vsel %vm33, %v24, -inf
    %35 = vmax.xlane.f32.xlu0 %v34
    %v36 = vpop.xlane.xlu0 %35
    %v37 = vsub.f32 %v24, %v36
    %v38 = vlaneseq
    %v39 = vand.u32 %v38, 127
    %vm40 = vcmp.eq.s32.totalorder %v39, %v32
    %v41 = vsel %vm40, %v37, 0.0
    %v42 = vsel %vm33, %v41, 0.0
    %43 = vadd.xlane.f32.xlu0 %v42
    %v44 = vpop.xlane.xlu0 %43
    %v45 = vmul.f32 %v37, 1.442695
    %v46 = vpow.pop %v45
    %v47 = vsel %vm33, %v46, 0.0
    %48 = vadd.xlane.f32.xlu0 %v47
    %v49 = vpop.xlane.xlu0 %48
    %v50 = vlog2.pop %v49
    %v51 = vmul.f32 %v50, 0.6931472
    %v52 = vsub.f32 %v51, %v44
    %v53 = vsub.f32 0.0, %v52
    %v54 = vmul.f32 %v53, 1.442695
    %v55 = vpow.pop %v54
    %v56 = vsub.f32 1.0, %v55
    %v57 = vmul.f32 %v56, %v56
    %v58 = vmul.f32 %v57, %v57
    %v59 = vmul.f32 %v58, 0.25
    %v60 = vmul.f32 %v59, %v52
    %vm61 = vcmask 7168
    %v62 = vsel %vm61, %v60, 0.0
    %63 = vadd.xlane.f32.xlu0 %v62
    %v64 = vpop.xlane.xlu0 %63
    %v65 = vrot.slane %v64, 4
    %v66 = vadd.f32 %v64, %v65
    %v67 = vrot.slane %v66, 2
    %v68 = vadd.f32 %v66, %v67
    %v69 = vrot.slane %v68, 1
    %v70 = vadd.f32 %v68, %v69
    %s71 = vtos %v70
    %v72 = vstv %s71
    %73 = vst [vmem:[#allocation5] sm:$0xff] %v72
    // Predicated region
    $region14: #{tpu_custom_call.1} parent=1 // pred_check
      _
    $region15: #{tpu_custom_call.1} parent=1 // pred_check_branch
      %75 = sbr.rel (0) target = $region17
    $region16: #{tpu_custom_call.1} parent=1 // pred_region
      %s77 = ssub.s32 128, 128
      %78 = vsyncadd [#allocation4], %s77
      %s80 = sshll.u32 [#allocation5], 4
      %s81 = int_to_ptr.vmem [resolvable:$true] %s80
      %83 = dma.vmem_to_hbm [thread:$0]  %s81, 128, %s2, [#allocation4]
    $region17: #{tpu_custom_call.1} parent=1 // pred_fallthru
      _
    // Predicated region
    $region18: #{tpu_custom_call.1} parent=1 // pred_check
      _
    $region19: #{tpu_custom_call.1} parent=1 // pred_check_branch
      %85 = sbr.rel (0) target = $region21
    $region20: #{tpu_custom_call.1} parent=1 // pred_region
      %86 = dma.done [#allocation4], 128
    $region21: #{tpu_custom_call.1} parent=1 // pred_fallthru
      _
    %87 = vsyncpa [#allocation3], 1
    %88 = vsyncpa [#allocation4], 1

</llo_original>
